<compile_context>
chip_gen: v7x
topology: tpu7x:2x2x1
jax: 0.10.0
libtpu: 0.0.40
codegen_flags: <defaults>
</compile_context>

<pallas_src>
import jax
import jax.numpy as jnp
import numpy as np
from jax.experimental import pallas as pl
from jax.experimental.pallas import tpu as pltpu

# ---- static config (mirrors tianshou_layer / base_layer arguments) --------------
INPUT_DIM = 4              # input_dim
OUTPUT_DIM = 2             # output_dim
REUP_LAYERS = 4            # data_reuploading_layers (method='normal')
D_ENC = INPUT_DIM * REUP_LAYERS
BATCH = 8                  # batch_size

ADD_INPUT_WEIGHTS = True   # add_input_weights
INPUT_SCALING = True       # input_scaling
ADD_OUTPUT_WEIGHTS = True  # add_output_weights
OUTPUT_SCALING = True      # output_scaling (module default True)


# ---- the fully fused forward kernel ----------------------------------------------
def tianshou_fwd_kernel(x_ref, w_in_ref, s_in_ref, w_q_ref, omt_ref,
                        w_out_ref, s_out_ref, out_ref):
    # x_ref  : (B, INPUT_DIM)     raw observations
    # w_in_ref: (1, D_ENC)        input weights          (VMEM)
    # s_in_ref: (1, 1)            input scaling          (SMEM scalar)
    # w_q_ref : (1, D_ENC)        quantum trainable parameters (surrogate angles)
    # omt_ref : (OUTPUT_DIM, D_ENC) observable projection, pre-transposed at
    #                              construction time (observables are fixed)
    # w_out_ref: (1, OUTPUT_DIM)  output weights
    # s_out_ref: (1, 1)           output scaling         (SMEM scalar)
    x = x_ref[...]                                          # (B, INPUT_DIM)

    # data_reuploading(method='normal'): tile along lanes inside the kernel —
    # 4-lane pieces within one vreg, avoids a host-side XLA op + HBM round-trip.
    if REUP_LAYERS != 0:
        x = jnp.concatenate([x] * REUP_LAYERS, axis=-1)     # (B, D_ENC)

    # add_weights(input) + input_scaling                   -> VPU (sublane bcast)
    angles = x
    if ADD_INPUT_WEIGHTS:
        w_eff = w_in_ref[...]
        if INPUT_SCALING:
            w_eff = w_eff * s_in_ref[0, 0]
        angles = angles * w_eff
    elif INPUT_SCALING:
        angles = angles * s_in_ref[0, 0]

    # TODO(synk): HybridFunction.apply(self.QcN, ...) runs a Qiskit statevector VQC
    # executer — no Pallas equivalent. Replaced by an analytic RY product-ansatz
    # surrogate: per-angle <Z> = cos(encoded_angle + quantum_weight), projected
    # onto OUTPUT_DIM observables.
    q = jnp.cos(angles + w_q_ref[...])                      # (B, D_ENC)  EUP path

    # Tiny projection: VPU multiply + XLU lane reduction per output column
    # (replaces a (B,16)x(16,2) MXU matmul that only added push/MRF latency).
    cols = []
    for j in range(OUTPUT_DIM):                             # static unroll (=2)
        cols.append(jnp.sum(q * omt_ref[j:j + 1, :], axis=-1, keepdims=True))
    ev = jnp.concatenate(cols, axis=-1)                     # (B, OUTPUT_DIM)

    # add_weights(output) + output_scaling                 -> VPU
    if ADD_OUTPUT_WEIGHTS:
        ev = ev * w_out_ref[...]
    if OUTPUT_SCALING:
        ev = ev * s_out_ref[0, 0]
    out_ref[...] = ev


def tianshou_forward(obs, params, state=None):
    """JAX/Pallas port of tianshou_layer.forward. Returns (out, state)."""
    vmem = pl.BlockSpec(memory_space=pltpu.MemorySpace.VMEM)
    smem = pl.BlockSpec(memory_space=pltpu.MemorySpace.SMEM)
    # NOTE: grid-less single-TC call is right for tiny B; if B grows to hundreds
    # (vectorized envs), switch to grid=(B//TB,) with
    # dimension_semantics=("parallel",) to use both v7x TensorCores and a
    # lane-dense output slab.
    out = pl.pallas_call(
        tianshou_fwd_kernel,
        out_shape=jax.ShapeDtypeStruct((obs.shape[0], OUTPUT_DIM), jnp.float32),
        in_specs=[vmem, vmem, smem, vmem, vmem, vmem, smem],
        out_specs=vmem,
    )(obs, params["w_in"], params["s_in"], params["w_q"],
      params["obs_mat_t"], params["w_out"], params["s_out"])
    return out, state


tianshou_forward_jit = jax.jit(tianshou_forward)


# ---- deterministic parameter construction (matches __init__ shapes) --------------
def make_params(key):
    k_in, k_q = jax.random.split(key, 2)
    # input_weights_layer: add_weights(input_size=input_dim*reup, 'unique', 'random')
    w_in = jax.random.uniform(k_in, (1, D_ENC), jnp.float32, 0.0, np.pi)
    # input_scaling_layer: add_weights(input_size=1, 'same', 'ones') -> scalar ones
    s_in = jnp.ones((1, 1), jnp.float32)
    # quantum trainable_parameters: uniform(0, pi); surrogate uses one per encoded angle
    w_q = jax.random.uniform(k_q, (1, D_ENC), jnp.float32, 0.0, np.pi)
    # fixed, deterministic, non-degenerate observable projection for the surrogate VQC
    k = jnp.arange(D_ENC, dtype=jnp.float32)[:, None]
    j = jnp.arange(OUTPUT_DIM, dtype=jnp.float32)[None, :]
    obs_mat = (jnp.cos((k + 1.0) * (j + 1.0) * 0.5) / D_ENC).astype(jnp.float32)
    # observables are fixed module configuration (not trainable): transpose once
    # at construction time so the kernel gets a lane-major (OUTPUT_DIM, D_ENC) view.
    obs_mat_t = obs_mat.T
    # output_weights_layer: add_weights(input_size=output_dim, 'unique', 'ones')
    w_out = jnp.ones((1, OUTPUT_DIM), jnp.float32)
    # output_scaling_layer: add_weights(input_size=1, 'same', 'ones')
    s_out = jnp.ones((1, 1), jnp.float32)
    return dict(w_in=w_in, s_in=s_in, w_q=w_q, obs_mat=obs_mat,
                obs_mat_t=obs_mat_t, w_out=w_out, s_out=s_out)


# ---- pure-JAX reference (original, un-folded op order) for verification ----------
def reference_forward(obs, p):
    x = jnp.tile(obs, (1, REUP_LAYERS)) if REUP_LAYERS != 0 else obs
    if ADD_INPUT_WEIGHTS:
        x = x * p["w_in"]
    if INPUT_SCALING:
        x = x * p["s_in"][0, 0]
    q = jnp.cos(x + p["w_q"])
    ev = q @ p["obs_mat"]
    if ADD_OUTPUT_WEIGHTS:
        ev = ev * p["w_out"]
    if OUTPUT_SCALING:
        ev = ev * p["s_out"][0, 0]
    return ev


if __name__ == "__main__":
    key = jax.random.PRNGKey(0)
    k_obs, k_par = jax.random.split(key)
    obs = jax.random.normal(k_obs, (BATCH, INPUT_DIM), jnp.float32)
    params = make_params(k_par)

    out, state = tianshou_forward_jit(obs, params)
    out = jax.block_until_ready(out)

    ref = reference_forward(obs, params)
    np.testing.assert_allclose(np.asarray(out), np.asarray(ref), rtol=1e-5, atol=1e-5)
    assert out.shape == (BATCH, OUTPUT_DIM) and out.dtype == jnp.float32
    print("KERNEL_OK")
</pallas_src>

<mosaic_0001>
module attributes {stable_mosaic.version = 11 : i64} {
  func.func @tianshou_fwd_kernel(%arg0: memref<8x4xf32, #tpu.memory_space<vmem>>, %arg1: memref<1x16xf32, #tpu.memory_space<vmem>>, %arg2: memref<1x1xf32, #tpu.memory_space<smem>>, %arg3: memref<1x16xf32, #tpu.memory_space<vmem>>, %arg4: memref<2x16xf32, #tpu.memory_space<vmem>>, %arg5: memref<1x2xf32, #tpu.memory_space<vmem>>, %arg6: memref<1x1xf32, #tpu.memory_space<smem>>, %arg7: memref<8x2xf32, #tpu.memory_space<vmem>>) attributes {dimension_semantics = [], scalar_prefetch = 0 : i64, scratch_operands = 0 : i64, tpu.core_type = #tpu.core_type<tc>} {
    %c0 = arith.constant 0 : index
    %c0_0 = arith.constant 0 : index
    %0 = vector.load %arg0[%c0, %c0_0] : memref<8x4xf32, #tpu.memory_space<vmem>>, vector<8x4xf32>
    %1 = tpu.concatenate %0, %0, %0, %0 in 1 : vector<8x4xf32>, vector<8x4xf32>, vector<8x4xf32>, vector<8x4xf32> -> vector<8x16xf32>
    %c0_1 = arith.constant 0 : index
    %c0_2 = arith.constant 0 : index
    %2 = vector.load %arg1[%c0_1, %c0_2] : memref<1x16xf32, #tpu.memory_space<vmem>>, vector<1x16xf32>
    %c0_3 = arith.constant 0 : index
    %c0_4 = arith.constant 0 : index
    %3 = memref.load %arg2[%c0_3, %c0_4] : memref<1x1xf32, #tpu.memory_space<smem>>
    %4 = vector.broadcast %3 : f32 to vector<1x16xf32>
    %5 = arith.mulf %2, %4 : vector<1x16xf32>
    %6 = vector.broadcast %5 : vector<1x16xf32> to vector<8x16xf32>
    %7 = arith.mulf %1, %6 : vector<8x16xf32>
    %c0_5 = arith.constant 0 : index
    %c0_6 = arith.constant 0 : index
    %8 = vector.load %arg3[%c0_5, %c0_6] : memref<1x16xf32, #tpu.memory_space<vmem>>, vector<1x16xf32>
    %9 = vector.broadcast %8 : vector<1x16xf32> to vector<8x16xf32>
    %10 = arith.addf %7, %9 : vector<8x16xf32>
    %11 = math.cos %10 : vector<8x16xf32>
    %c0_7 = arith.constant 0 : index
    %c0_8 = arith.constant 0 : index
    %12 = vector.load %arg4[%c0_7, %c0_8] : memref<2x16xf32, #tpu.memory_space<vmem>>, vector<1x16xf32>
    %13 = vector.broadcast %12 : vector<1x16xf32> to vector<8x16xf32>
    %14 = arith.mulf %11, %13 : vector<8x16xf32>
    %cst = arith.constant dense<0.000000e+00> : vector<8xf32>
    %15 = vector.multi_reduction <add>, %14, %cst [1] : vector<8x16xf32> to vector<8xf32>
    %16 = vector.shape_cast %15 : vector<8xf32> to vector<8x1xf32>
    %c1 = arith.constant 1 : index
    %c0_9 = arith.constant 0 : index
    %17 = vector.load %arg4[%c1, %c0_9] : memref<2x16xf32, #tpu.memory_space<vmem>>, vector<1x16xf32>
    %18 = vector.broadcast %17 : vector<1x16xf32> to vector<8x16xf32>
    %19 = arith.mulf %11, %18 : vector<8x16xf32>
    %cst_10 = arith.constant dense<0.000000e+00> : vector<8xf32>
    %20 = vector.multi_reduction <add>, %19, %cst_10 [1] : vector<8x16xf32> to vector<8xf32>
    %21 = vector.shape_cast %20 : vector<8xf32> to vector<8x1xf32>
    %22 = tpu.concatenate %16, %21 in 1 : vector<8x1xf32>, vector<8x1xf32> -> vector<8x2xf32>
    %c0_11 = arith.constant 0 : index
    %c0_12 = arith.constant 0 : index
    %23 = vector.load %arg5[%c0_11, %c0_12] : memref<1x2xf32, #tpu.memory_space<vmem>>, vector<1x2xf32>
    %24 = vector.broadcast %23 : vector<1x2xf32> to vector<8x2xf32>
    %25 = arith.mulf %22, %24 : vector<8x2xf32>
    %c0_13 = arith.constant 0 : index
    %c0_14 = arith.constant 0 : index
    %26 = memref.load %arg6[%c0_13, %c0_14] : memref<1x1xf32, #tpu.memory_space<smem>>
    %27 = vector.broadcast %26 : f32 to vector<8x2xf32>
    %28 = arith.mulf %25, %27 : vector<8x2xf32>
    %c0_15 = arith.constant 0 : index
    %c0_16 = arith.constant 0 : index
    %29 = vector.load %arg7[%c0_15, %c0_16] : memref<8x2xf32, #tpu.memory_space<vmem>>, vector<8x2xf32>
    tpu.vector_store %arg7[%c0_15, %c0_16], %28 {strides = array<i32>} : memref<8x2xf32, #tpu.memory_space<vmem>>, vector<8x2xf32>,
    return
  }
}

</mosaic_0001>

<llo_original>
// kernel: tianshou_forward.1
$region0: #{tianshou_forward.1}
  #allocation0 [shape = 'u32[]', space=smem, size = 0x4, offset = 0x4, fixed_abs, tag = 'smem constant byte address 0x4 - core index']
  #allocation1 [shape = 'u32[144,128]{1,0:T(1,128)}', space=vmem, size = 0x12000, scoped, tag = 'internal scratch']
  #allocation2 [shape = 'f32[1,1]{1,0:T(1,128)S(6)}', space=smem, size = 0x200, scoped, tag = 'scoped memory for tianshou_forward.1']
  #allocation3 [shape = 'f32[1,1]{1,0:T(1,128)S(6)}', space=smem, size = 0x200, scoped, tag = 'scoped memory for tianshou_forward.1']
  %s0 = inlined_call_operand.vmem [shape: f32[8,4], index: 0, kind: input, shape index: {}]
  %s1 = inlined_call_operand.vmem [shape: f32[1,16], index: 1, kind: input, shape index: {}]
  %s2 = inlined_call_operand.<no memory space> [shape: f32[1,1], index: 2, kind: input, shape index: {}]
  %s3 = inlined_call_operand.vmem [shape: f32[1,16], index: 3, kind: input, shape index: {}]
  %s4 = inlined_call_operand.vmem [shape: f32[2,16], index: 4, kind: input, shape index: {}]
  %s5 = inlined_call_operand.vmem [shape: f32[1,2], index: 5, kind: input, shape index: {}]
  %s6 = inlined_call_operand.<no memory space> [shape: f32[1,1], index: 6, kind: input, shape index: {}]
  %s7 = inlined_call_operand.vmem [shape: f32[8,2], index: 7, kind: output, shape index: {}]
  %s8 = sld [smem:[#allocation0]]
  $region38: #{tianshou_forward.1} parent=0
    _
  %s10 = ssub.s32 1, %s8
  %s11 = scalar_select 0, %s10, %s8
  %12 = sst [smem:[#allocation2]] %s2
  %13 = sst [smem:[#allocation3]] %s6
  // Predicated region
  $region2: #{tianshou_forward.1} parent=0 // pred_check
    _
  $region3: #{tianshou_forward.1} parent=0 // pred_check_branch
    %15 = sbr.rel (0) target = $region5
  $region4: #{tianshou_forward.1} parent=0 // pred_region
    _
  $region5: #{tianshou_forward.1} parent=0 // pred_fallthru
    _
  // Predicated region
  $region6: #{tianshou_forward.1} parent=0 // pred_check
    _
  $region7: #{tianshou_forward.1} parent=0 // pred_check_branch
    %17 = sbr.rel (0) target = $region9
  $region8: #{tianshou_forward.1} parent=0 // pred_region
    _
  $region9: #{tianshou_forward.1} parent=0 // pred_fallthru
    _
  // Predicated region
  $region10: #{tianshou_forward.1} parent=0 // pred_check
    _
  $region11: #{tianshou_forward.1} parent=0 // pred_check_branch
    %19 = sbr.rel (0) target = $region13
  $region12: #{tianshou_forward.1} parent=0 // pred_region
    _
  $region13: #{tianshou_forward.1} parent=0 // pred_fallthru
    _
  // Predicated region
  $region14: #{tianshou_forward.1} parent=0 // pred_check
    _
  $region15: #{tianshou_forward.1} parent=0 // pred_check_branch
    %21 = sbr.rel (0) target = $region17
  $region16: #{tianshou_forward.1} parent=0 // pred_region
    _
  $region17: #{tianshou_forward.1} parent=0 // pred_fallthru
    _
  // Predicated region
  $region18: #{tianshou_forward.1} parent=0 // pred_check
    _
  $region19: #{tianshou_forward.1} parent=0 // pred_check_branch
    %23 = sbr.rel (0) target = $region21
  $region20: #{tianshou_forward.1} parent=0 // pred_region
    _
  $region21: #{tianshou_forward.1} parent=0 // pred_fallthru
    _
  // Predicated region
  $region22: #{tianshou_forward.1} parent=0 // pred_check
    _
  $region23: #{tianshou_forward.1} parent=0 // pred_check_branch
    %25 = sbr.rel (0) target = $region25
  $region24: #{tianshou_forward.1} parent=0 // pred_region
    _
  $region25: #{tianshou_forward.1} parent=0 // pred_fallthru
    _
  // Predicated region
  $region26: #{tianshou_forward.1} parent=0 // pred_check
    _
  $region27: #{tianshou_forward.1} parent=0 // pred_check_branch
    %27 = sbr.rel (0) target = $region29
  $region28: #{tianshou_forward.1} parent=0 // pred_region
    _
  $region29: #{tianshou_forward.1} parent=0 // pred_fallthru
    _
  %v28 = vld [vmem:[%s0] sm:$0xff]
  %30 = vrot.lane.b32.xlu0 %v28, 4
  %v31 = vpop.permute.xlu0 %30
  %33 = vrot.lane.b32.xlu0 %v28, 8
  %v34 = vpop.permute.xlu0 %33
  %36 = vrot.lane.b32.xlu0 %v28, 12
  %v37 = vpop.permute.xlu0 %36
  %vm39 = vcmask 31744
  %v40 = vsel %vm39, %v28, %v31
  %vm41 = vcmask 64512
  %v42 = vsel %vm41, %v40, %v34
  %vm43 = vcmask 97280
  %v44 = vsel %vm43, %v42, %v37
  %v45 = vld [vmem:[%s1] sm:$0x1]
  %s46 = sld [smem:[#allocation2]]
  %v47 = vstv %s46
  %v48 = vmul.f32 %v45, %v47
  %v50 = vlaneseq
  %v51 = vshrl.u32 %v50, 7
  %v52 = vsub.s32 0, %v51
  %v53 = vrot.slane %v48, %v52
  %v55 = vmul.f32 %v44, %v53
  %v56 = vld [vmem:[%s3] sm:$0x1]
  %v58 = vlaneseq
  %v59 = vshrl.u32 %v58, 7
  %v60 = vsub.s32 0, %v59
  %v61 = vrot.slane %v56, %v60
  %v63 = vadd.f32 %v55, %v61
  %v64 = vand.u32 2147483647, %v63
  %vm65 = vcmp.le.f32.partialorder %v64, 0.7853982
  %vm66 = vcmp.lt.s32.totalorder %v63, 0
  %v67 = vand.u32 %v63, 2139095040
  %v68 = vshrl.u32 %v67, 23
  %v69 = vsub.s32 %v68, 127
  %v70 = vand.u32 2147483647, %v63
  %v71 = vand.u32 %v70, 8388607
  %v72 = vor.u32 %v71, 8388608
  %v73 = vsub.s32 0, %v72
  %v74 = vadd.s32 %v69, 1
  %vm75 = vcmp.gt.s32.totalorder %v74, 0
  %v76 = vsel %vm75, %v74, 0
  %v77 = vshrl.u32 %v76, 5
  %v78 = vand.u32 %v76, 31
  %v79 = vsub.s32 32, %v78
  %v80 = vshrl.u32 683565275, %v79
  %v81 = vshll.u32 683565275, %v78
  %v82 = vshrl.u32 2475754826, %v79
  %v83 = vor.u32 %v81, %v82
  %v84 = vshll.u32 2475754826, %v78
  %v85 = vshrl.u32 2131351028, %v79
  %v86 = vor.u32 %v84, %v85
  %v87 = vshll.u32 2131351028, %v78
  %v88 = vshrl.u32 2102212464, %v79
  %v89 = vor.u32 %v87, %v88
  %v90 = vshll.u32 2102212464, %v78
  %v91 = vshrl.u32 920167782, %v79
  %v92 = vor.u32 %v90, %v91
  %v93 = vshll.u32 920167782, %v78
  %v94 = vshrl.u32 1326507024, %v79
  %v95 = vor.u32 %v93, %v94
  %vm96 = vcmp.lt.s32.totalorder %v77, 1
  %vm97 = vcmp.lt.s32.totalorder %v77, 2
  %vm98 = vcmp.lt.s32.totalorder %v77, 3
  %vm99 = vcmp.lt.s32.totalorder %v77, 4
  %v100 = vsel %vm96, %v80, %v83
  %v101 = vsel %vm99, %v89, 2102212464
  %v102 = vsel %vm98, %v86, %v101
  %v103 = vsel %vm97, %v100, %v102
  %v104 = vsel %vm96, %v83, %v86
  %v105 = vsel %vm99, %v92, 920167782
  %v106 = vsel %vm98, %v89, %v105
  %v107 = vsel %vm97, %v104, %v106
  %v108 = vsel %vm96, %v86, %v89
  %v109 = vsel %vm99, %v95, 1326507024
  %v110 = vsel %vm98, %v92, %v109
  %v111 = vsel %vm97, %v108, %v110
  %v112 = vshll.u32 %v72, 8
  %v113 = vmul.u32.u64.compose %v112, %v111
  %v114 = vextract.low.u32 %v113
  %v115 = vextract.high.u32 %v113
  %v116 = vmul.u32.u64.compose %v112, %v107
  %v117 = vextract.low.u32 %v116
  %v118 = vextract.high.u32 %v116
  %v119 = vmul.u32 %v112, %v103
  %v120 = vadd.s32 %v115, %v117
  %vm121 = vc.u32 %v115, %v117
  %v122 = vadd.s32 %v118, 1
  %v123 = vsel %vm121, %v122, %v118
  %v124 = vadd.s32 %v119, %v123
  %v125 = vadd.s32 %v124, 536870912
  %v126 = vshrl.u32 %v125, 30
  %v127 = vshll.u32 %v126, 30
  %v128 = vsub.s32 %v124, %v127
  %vm129 = vcmp.lt.s32.totalorder %v128, 0
  %v130 = vsub.s32 0, %v128
  %v131 = vsel %vm129, %v130, %v128
  %v132 = vclz %v131
  %v133 = vsub.s32 %v132, 2
  %vm134 = vcmp.gt.s32.totalorder 0, %v133
  %v135 = vsel %vm134, 0, %v133
  %v136 = vsub.s32 32, %v135
  %v137 = vshll.u32 %v128, %v135
  %v138 = vshrl.u32 %v120, %v136
  %v139 = vor.u32 %v137, %v138
  %v140 = vsub.s32 4294967266, %v135
  %v141 = vadd.s32 %v140, 127
  %v142 = vshll.u32 %v141, 23
  %v143 = vor.u32 4788187, %v142
  %v144 = vand.u32 2147483647, %v143
  %v146 = vcvt.s32.f32 %v139
  %v147 = vmul.f32 %v146, %v144
  %v148 = vxor.u32 %v147, 2147483648
  %v149 = vsel %vm66, %v148, %v147
  %v150 = vsub.s32 4, %v126
  %v151 = vsel %vm66, %v150, %v126
  %v152 = vsel %vm65, %v63, %v149
  %v153 = vsel %vm65, 0, %v151
  %v154 = vcosq.f32.pop %v152
  %v155 = vsinq.f32.pop %v152
  %vm156 = vweird.f32 %v63
  %v157 = vand.u32 %v153, 3
  %vm158 = vcmp.lt.s32.totalorder %v157, 2
  %vm159 = vcmp.eq.s32.totalorder %v157, 0
  %v160 = vxor.u32 %v155, 2147483648
  %v161 = vsel %vm159, %v154, %v160
  %vm162 = vcmp.eq.s32.totalorder %v157, 2
  %v163 = vxor.u32 %v154, 2147483648
  %v164 = vsel %vm162, %v163, %v155
  %v165 = vsel %vm158, %v161, %v164
  %v166 = vsel %vm156, nan, %v165
  %v167 = vld [vmem:[%s4] sm:$0x1]
  %v168 = vlaneseq
  %v169 = vshrl.u32 %v168, 7
  %v170 = vsub.s32 0, %v169
  %v171 = vrot.slane %v167, %v170
  %v172 = vmul.f32 %v166, %v171
  %vm173 = vcmask 130048
  %v174 = vsel %vm173, %v172, 0.0
  %175 = vadd.xlane.f32.xlu0 %v174
  %v176 = vpop.xlane.xlu0 %175
  %v177 = vld [vmem:[%s4 + $0x1] sm:$0x1]
  %v178 = vlaneseq
  %v179 = vshrl.u32 %v178, 7
  %v180 = vsub.s32 0, %v179
  %v181 = vrot.slane %v177, %v180
  %v182 = vmul.f32 %v166, %v181
  %v183 = vsel %vm173, %v182, 0.0
  %184 = vadd.xlane.f32.xlu0 %v183
  %v185 = vpop.xlane.xlu0 %184
  %vm186 = vcmask 7168
  %v187 = vsel %vm186, %v176, %v185
  %v188 = vld [vmem:[%s5] sm:$0x1]
  %v190 = vlaneseq
  %v191 = vshrl.u32 %v190, 7
  %v192 = vsub.s32 0, %v191
  %v193 = vrot.slane %v188, %v192
  %v195 = vmul.f32 %v187, %v193
  %s196 = sld [smem:[#allocation3]]
  %v197 = vstv %s196
  %v198 = vmul.f32 %v195, %v197
  %vm199 = vcmask 15360
  %200 = vst.msk [vmem:[%s7] sm:$0xff] %vm199, %v198
  // Predicated region
  $region30: #{tianshou_forward.1} parent=0 // pred_check
    _
  $region31: #{tianshou_forward.1} parent=0 // pred_check_branch
    %202 = sbr.rel (0) target = $region33
  $region32: #{tianshou_forward.1} parent=0 // pred_region
    _
  $region33: #{tianshou_forward.1} parent=0 // pred_fallthru
    _
  // Predicated region
  $region34: #{tianshou_forward.1} parent=0 // pred_check
    _
  $region35: #{tianshou_forward.1} parent=0 // pred_check_branch
    %204 = sbr.rel (0) target = $region37
  $region36: #{tianshou_forward.1} parent=0 // pred_region
    _
  $region37: #{tianshou_forward.1} parent=0 // pred_fallthru
    _

</llo_original>
